<compile_context>
chip_gen: v7x
topology: tpu7x:2x2x1
jax: 0.10.0
libtpu: 0.0.40
codegen_flags: <defaults>
</compile_context>

<pallas_src>
import jax
import jax.numpy as jnp
from jax.experimental import pallas as pl
from jax.experimental.pallas import tpu as pltpu


_MXU_MIN_H2 = 128  # below one lane tile the MXU matvec paths waste lanes; use the VPU


def _attention_kernel(enc_ref, z_ref, w_ref, bias_ref, out_ref, m_sc, l_sc, acc_sc):
    # enc_ref: (BB, BS, H2) native dtype   z_ref: (BB, H2) native dtype
    # w_ref:   (2, H2) f32 (row 0 = Wh, row 1 = Wz)   bias_ref: SMEM (1,) f32
    # out_ref: (BB, H2)   scratch: m/l (BB, 1) f32, acc (BB, H2) f32
    sj = pl.program_id(1)

    @pl.when(sj == 0)
    def _init():
        m_sc[...] = jnp.full_like(m_sc, -jnp.inf)
        l_sc[...] = jnp.zeros_like(l_sc)
        acc_sc[...] = jnp.zeros_like(acc_sc)

    enc = enc_ref[...]                         # (BB, BS, H2)
    z = z_ref[...]                             # (BB, H2)
    wh = w_ref[0:1, :]                         # (1, H2) f32  (multiplies tanh(h))
    wz = w_ref[1:2, :]                         # (1, H2) f32  (multiplies tanh(z))
    bias = bias_ref[0]                         # f32 scalar

    BB, BS, H2 = enc.shape

    # tanh in native dtype (bf16 EUP path on v6e/v7x; v5e upcasts internally, HBM-bound anyway)
    th = jnp.tanh(enc)                         # (BB, BS, H2)
    tz = jnp.tanh(z)                           # (BB, H2)

    # ---- score projection: score[b, s] = Wh . tanh(h_bs) + Wz . tanh(z_b) + bias ----
    if H2 >= _MXU_MIN_H2:
        # MXU contraction over H2 with f32 accumulation; no tile-sized f32 cast of tanh(enc).
        h_score = jax.lax.dot_general(
            th.reshape(BB * BS, H2), wh.astype(th.dtype),
            dimension_numbers=(((1,), (1,)), ((), ())),
            preferred_element_type=jnp.float32,
        ).reshape(BB, BS)                                                          # (BB, BS)
    else:
        h_score = jnp.sum(th.astype(jnp.float32) * wh[None, :, :], axis=-1)        # (BB, BS)

    z_score = jnp.sum(tz.astype(jnp.float32) * wz, axis=-1, keepdims=True)         # (BB, 1)
    scores = jnp.maximum(h_score + z_score + bias, 0.0)                             # ReLU

    # ---- online softmax over sequence tiles (lane-dense 2-D, f32) ----
    m_prev = m_sc[...]                                                              # (BB, 1)
    m_new = jnp.maximum(m_prev, jnp.max(scores, axis=-1, keepdims=True))
    corr = jnp.exp(m_prev - m_new)                                                  # (BB, 1)
    p = jnp.exp(scores - m_new)                                                     # (BB, BS)
    l_sc[...] = corr * l_sc[...] + jnp.sum(p, axis=-1, keepdims=True)

    # ---- weighted sum over this sequence tile ----
    if H2 >= _MXU_MIN_H2:
        # Batched MXU matvec (BB,1,BS) x (BB,BS,H2) -> (BB,1,H2); avoids f32 copy of enc.
        upd = jnp.einsum('bqs,bsh->bqh', p[:, None, :].astype(enc.dtype), enc,
                         preferred_element_type=jnp.float32)[:, 0, :]               # (BB, H2)
    else:
        upd = jnp.sum(p[:, :, None] * enc.astype(jnp.float32), axis=1)              # (BB, H2)

    acc_sc[...] = corr * acc_sc[...] + upd
    m_sc[...] = m_new

    @pl.when(sj == pl.num_programs(1) - 1)
    def _finalize():
        # exact division (approx reciprocal would cost ~1e-4 rel error)
        out_ref[...] = (acc_sc[...] / l_sc[...]).astype(out_ref.dtype)


def _vmem_capacity_bytes():
    try:
        return int(pltpu.get_tpu_info().vmem_capacity_bytes)
    except Exception:
        return 64 * 2**20          # conservative fallback = v7x per-TensorCore VMEM


def _divisor_tiles(n):
    """Tile sizes for an axis of length n: n itself plus divisors that are multiples of 8
    (keeps the sublane dim of every 2-D block unmasked per the (8,128) rule)."""
    tiles = {n}
    for d in range(8, n, 8):
        if n % d == 0:
            tiles.add(d)
    return sorted(tiles)


def _choose_tiles(B, S, H2, itemsize, vmem_budget_bytes):
    """Largest (block_b, block_s) whose *total* footprint (pipeline buffers + in-kernel
    temps + scratch) fits the generation-aware budget, preferring >= 4 grid steps
    (>= 2 per v7x TensorCore) so the enc DMA overlaps compute, then >= 2 steps."""

    def footprint(bb, bs):
        enc_native = bb * bs * H2 * itemsize
        enc_f32 = bb * bs * H2 * 4
        # 2x double-buffered enc DMA + tanh(enc) temp + ~1 tile-sized f32 temp
        # + z/out double-buffers + f32 scratch (m, l, acc).
        small = 4 * bb * H2 * itemsize + (bb * H2 + 2 * bb) * 4
        return 2 * enc_native + enc_native + enc_f32 + small

    candidates = [(bb, bs)
                  for bb in _divisor_tiles(B)
                  for bs in _divisor_tiles(S)
                  if footprint(bb, bs) <= vmem_budget_bytes]
    if not candidates:
        candidates = [(min(_divisor_tiles(B)), min(_divisor_tiles(S)))]

    def rank(t):
        bb, bs = t
        steps = (B // bb) * (S // bs)
        step_class = 2 if steps >= 4 else (1 if steps >= 2 else 0)
        # within a class: biggest tile, prefer full-S tiles (fewer online-softmax passes)
        return (step_class, bb * bs, bs)

    return max(candidates, key=rank)


def attention_pallas(encoder_outputs, decoder_hidden, W, b, *, block_b=None, block_s=None):
    """encoder_outputs: (B, S, H2) batch-first (as at the PyTorch call site),
    decoder_hidden: (n_layers, B, H2), W: (1, 2*H2) Linear weight, b: scalar bias."""
    B, S, H2 = encoder_outputs.shape
    itemsize = jnp.dtype(encoder_outputs.dtype).itemsize

    vmem_budget = int(0.75 * _vmem_capacity_bytes())      # never exceed physical VMEM

    auto_bb, auto_bs = _choose_tiles(B, S, H2, itemsize, vmem_budget)
    block_b = auto_bb if block_b is None else block_b
    block_s = auto_bs if block_s is None else block_s
    assert B % block_b == 0 and S % block_s == 0

    # glue (weight-sized only): last hidden layer; pack Wh / Wz rows into one (2, H2) f32
    z = decoder_hidden[-1]                                                            # (B, H2)
    w_packed = jnp.concatenate([W[:, :H2], W[:, H2:]], axis=0).astype(jnp.float32)    # (2, H2)
    bias = jnp.asarray(b, jnp.float32).reshape((1,))

    grid = (B // block_b, S // block_s)                    # batch parallel, seq reduction

    return pl.pallas_call(
        _attention_kernel,
        out_shape=jax.ShapeDtypeStruct((B, H2), encoder_outputs.dtype),
        grid=grid,
        in_specs=[
            pl.BlockSpec((block_b, block_s, H2), lambda i, j: (i, j, 0)),  # contiguous tile
            pl.BlockSpec((block_b, H2), lambda i, j: (i, 0)),
            pl.BlockSpec((2, H2), lambda i, j: (0, 0)),
            pl.BlockSpec(memory_space=pltpu.MemorySpace.SMEM),
        ],
        out_specs=pl.BlockSpec((block_b, H2), lambda i, j: (i, 0)),
        scratch_shapes=[
            pltpu.VMEM((block_b, 1), jnp.float32),     # running max  (online softmax)
            pltpu.VMEM((block_b, 1), jnp.float32),     # running sum of exp
            pltpu.VMEM((block_b, H2), jnp.float32),    # running weighted sum
        ],
        compiler_params=pltpu.CompilerParams(
            dimension_semantics=("parallel", "arbitrary"),
            vmem_limit_bytes=vmem_budget,
        ),
    )(encoder_outputs, z, w_packed, bias)


def attention_ref(encoder_outputs, decoder_hidden, W, b):
    """Pure-JAX reference matching the PyTorch forward exactly."""
    enc = jnp.transpose(encoder_outputs, (1, 0, 2))   # (S, B, H2)
    z = decoder_hidden[-1]                            # (B, H2)
    zb = jnp.broadcast_to(z[None], enc.shape)
    cat = jnp.concatenate([enc, zb], axis=-1)         # (S, B, 2*H2)
    lin = jnp.einsum("sbc,oc->sbo", jnp.tanh(cat), W)[..., 0] + b   # (S, B)
    scores = jax.nn.relu(lin)
    alpha = jax.nn.softmax(scores, axis=0)            # softmax over sequence
    return jnp.sum(alpha[..., None] * enc, axis=0)    # (B, H2)


if __name__ == "__main__":
    hid_dim = 16
    H2 = hid_dim * 2          # 32  (module stores hid_dim * 2)
    B = 16                    # batch
    S = 8                     # sequence length
    n_layers = 2

    key = jax.random.PRNGKey(0)
    k1, k2, k3, k4 = jax.random.split(key, 4)

    encoder_outputs = jax.random.normal(k1, (B, S, H2), dtype=jnp.float32)
    decoder_hidden = jax.random.normal(k2, (n_layers, B, H2), dtype=jnp.float32)

    # Deterministic Linear(2*H2 -> 1) parameters (PyTorch-style uniform init bound).
    bound = 1.0 / jnp.sqrt(jnp.asarray(2 * H2, jnp.float32))
    W = jax.random.uniform(k3, (1, 2 * H2), minval=-bound, maxval=bound, dtype=jnp.float32)
    bvec = jax.random.uniform(k4, (1,), minval=-bound, maxval=bound, dtype=jnp.float32)
    b = bvec[0]

    out = attention_pallas(encoder_outputs, decoder_hidden, W, b)
    out = jax.block_until_ready(out)

    ref = attention_ref(encoder_outputs, decoder_hidden, W, b)
    assert out.shape == (B, H2)
    assert jnp.allclose(out, ref, rtol=1e-5, atol=1e-5), "Pallas output mismatch vs reference"

    print("KERNEL_OK")
</pallas_src>

<mosaic_0001>
module attributes {stable_mosaic.version = 11 : i64} {
  func.func @_attention_kernel(%arg0: i32, %arg1: i32, %arg2: memref<8x8x32xf32, #tpu.memory_space<vmem>>, %arg3: memref<8x32xf32, #tpu.memory_space<vmem>>, %arg4: memref<2x32xf32, #tpu.memory_space<vmem>>, %arg5: memref<1xf32, #tpu.memory_space<smem>>, %arg6: memref<8x32xf32, #tpu.memory_space<vmem>>, %arg7: memref<8x1xf32, #tpu.memory_space<vmem>>, %arg8: memref<8x1xf32, #tpu.memory_space<vmem>>, %arg9: memref<8x32xf32, #tpu.memory_space<vmem>>) attributes {dimension_semantics = [#tpu.dimension_semantics<parallel>, #tpu.dimension_semantics<arbitrary>], iteration_bounds = array<i64: 2, 1>, scalar_prefetch = 0 : i64, scratch_operands = 3 : i64, tpu.core_type = #tpu.core_type<tc>, window_params = [{transform_indices = @transform_0, window_bounds = array<i64: 8, 8, 32>}, {transform_indices = @transform_1, window_bounds = array<i64: 8, 32>}, {pipeline_mode = #tpu.pipeline_mode<synchronous>, transform_indices = @transform_2, window_bounds = array<i64: 2, 32>}, {transform_indices = @transform_3, window_bounds = array<i64: 1>}, {transform_indices = @transform_4, window_bounds = array<i64: 8, 32>}]} {
    %c0_i32 = arith.constant 0 : i32
    %0 = arith.cmpi eq, %arg1, %c0_i32 : i32
    %1 = arith.extui %0 : i1 to i32
    %c0_i32_0 = arith.constant 0 : i32
    %2 = arith.cmpi ne, %1, %c0_i32_0 : i32
    scf.if %2 {
      %cst_28 = arith.constant 0xFF800000 : f32
      %52 = vector.broadcast %cst_28 : f32 to vector<8x1xf32>
      %c0_29 = arith.constant 0 : index
      %c0_30 = arith.constant 0 : index
      %53 = vector.load %arg7[%c0_29, %c0_30] : memref<8x1xf32, #tpu.memory_space<vmem>>, vector<8x1xf32>
      tpu.vector_store %arg7[%c0_29, %c0_30], %52 {strides = array<i32>} : memref<8x1xf32, #tpu.memory_space<vmem>>, vector<8x1xf32>,
      %cst_31 = arith.constant 0.000000e+00 : f32
      %54 = vector.broadcast %cst_31 : f32 to vector<8x1xf32>
      %c0_32 = arith.constant 0 : index
      %c0_33 = arith.constant 0 : index
      %55 = vector.load %arg8[%c0_32, %c0_33] : memref<8x1xf32, #tpu.memory_space<vmem>>, vector<8x1xf32>
      tpu.vector_store %arg8[%c0_32, %c0_33], %54 {strides = array<i32>} : memref<8x1xf32, #tpu.memory_space<vmem>>, vector<8x1xf32>,
      %cst_34 = arith.constant 0.000000e+00 : f32
      %56 = vector.broadcast %cst_34 : f32 to vector<8x32xf32>
      %c0_35 = arith.constant 0 : index
      %c0_36 = arith.constant 0 : index
      %57 = vector.load %arg9[%c0_35, %c0_36] : memref<8x32xf32, #tpu.memory_space<vmem>>, vector<8x32xf32>
      tpu.vector_store %arg9[%c0_35, %c0_36], %56 {strides = array<i32>} : memref<8x32xf32, #tpu.memory_space<vmem>>, vector<8x32xf32>,
    } else {
    }
    %c0 = arith.constant 0 : index
    %c0_1 = arith.constant 0 : index
    %c0_2 = arith.constant 0 : index
    %3 = vector.load %arg2[%c0, %c0_1, %c0_2] : memref<8x8x32xf32, #tpu.memory_space<vmem>>, vector<8x8x32xf32>
    %c0_3 = arith.constant 0 : index
    %c0_4 = arith.constant 0 : index
    %4 = vector.load %arg3[%c0_3, %c0_4] : memref<8x32xf32, #tpu.memory_space<vmem>>, vector<8x32xf32>
    %c0_5 = arith.constant 0 : index
    %c0_6 = arith.constant 0 : index
    %5 = vector.load %arg4[%c0_5, %c0_6] : memref<2x32xf32, #tpu.memory_space<vmem>>, vector<1x32xf32>
    %c1 = arith.constant 1 : index
    %c0_7 = arith.constant 0 : index
    %6 = vector.load %arg4[%c1, %c0_7] : memref<2x32xf32, #tpu.memory_space<vmem>>, vector<1x32xf32>
    %c0_8 = arith.constant 0 : index
    %7 = memref.load %arg5[%c0_8] : memref<1xf32, #tpu.memory_space<smem>>
    %8 = math.tanh %3 : vector<8x8x32xf32>
    %9 = math.tanh %4 : vector<8x32xf32>
    %10 = vector.shape_cast %5 : vector<1x32xf32> to vector<1x1x32xf32>
    %11 = vector.broadcast %10 : vector<1x1x32xf32> to vector<8x8x32xf32>
    %12 = arith.mulf %8, %11 : vector<8x8x32xf32>
    %cst = arith.constant dense<0.000000e+00> : vector<8x8xf32>
    %13 = vector.multi_reduction <add>, %12, %cst [2] : vector<8x8x32xf32> to vector<8x8xf32>
    %14 = vector.broadcast %6 : vector<1x32xf32> to vector<8x32xf32>
    %15 = arith.mulf %9, %14 : vector<8x32xf32>
    %cst_9 = arith.constant dense<0.000000e+00> : vector<8xf32>
    %16 = vector.multi_reduction <add>, %15, %cst_9 [1] : vector<8x32xf32> to vector<8xf32>
    %17 = vector.shape_cast %16 : vector<8xf32> to vector<8x1xf32>
    %18 = vector.broadcast %17 : vector<8x1xf32> to vector<8x8xf32>
    %19 = arith.addf %13, %18 : vector<8x8xf32>
    %20 = vector.broadcast %7 : f32 to vector<8x8xf32>
    %21 = arith.addf %19, %20 : vector<8x8xf32>
    %cst_10 = arith.constant 0.000000e+00 : f32
    %22 = vector.broadcast %cst_10 : f32 to vector<8x8xf32>
    %23 = arith.maximumf %21, %22 : vector<8x8xf32>
    %c0_11 = arith.constant 0 : index
    %c0_12 = arith.constant 0 : index
    %24 = vector.load %arg7[%c0_11, %c0_12] : memref<8x1xf32, #tpu.memory_space<vmem>>, vector<8x1xf32>
    %cst_13 = arith.constant dense<0xFF800000> : vector<8xf32>
    %25 = vector.multi_reduction <maximumf>, %23, %cst_13 [1] : vector<8x8xf32> to vector<8xf32>
    %26 = vector.shape_cast %25 : vector<8xf32> to vector<8x1xf32>
    %27 = arith.maximumf %24, %26 : vector<8x1xf32>
    %28 = arith.subf %24, %27 : vector<8x1xf32>
    %29 = math.exp %28 : vector<8x1xf32>
    %30 = vector.broadcast %27 : vector<8x1xf32> to vector<8x8xf32>
    %31 = arith.subf %23, %30 : vector<8x8xf32>
    %32 = math.exp %31 : vector<8x8xf32>
    %c0_14 = arith.constant 0 : index
    %c0_15 = arith.constant 0 : index
    %33 = vector.load %arg8[%c0_14, %c0_15] : memref<8x1xf32, #tpu.memory_space<vmem>>, vector<8x1xf32>
    %34 = arith.mulf %29, %33 : vector<8x1xf32>
    %cst_16 = arith.constant dense<0.000000e+00> : vector<8xf32>
    %35 = vector.multi_reduction <add>, %32, %cst_16 [1] : vector<8x8xf32> to vector<8xf32>
    %36 = vector.shape_cast %35 : vector<8xf32> to vector<8x1xf32>
    %37 = arith.addf %34, %36 : vector<8x1xf32>
    %c0_17 = arith.constant 0 : index
    %c0_18 = arith.constant 0 : index
    %38 = vector.load %arg8[%c0_17, %c0_18] : memref<8x1xf32, #tpu.memory_space<vmem>>, vector<8x1xf32>
    tpu.vector_store %arg8[%c0_17, %c0_18], %37 {strides = array<i32>} : memref<8x1xf32, #tpu.memory_space<vmem>>, vector<8x1xf32>,
    %39 = vector.shape_cast %32 : vector<8x8xf32> to vector<8x8x1xf32>
    %40 = vector.broadcast %39 : vector<8x8x1xf32> to vector<8x8x32xf32>
    %41 = arith.mulf %40, %3 : vector<8x8x32xf32>
    %cst_19 = arith.constant dense<0.000000e+00> : vector<8x32xf32>
    %42 = vector.multi_reduction <add>, %41, %cst_19 [1] : vector<8x8x32xf32> to vector<8x32xf32>
    %c0_20 = arith.constant 0 : index
    %c0_21 = arith.constant 0 : index
    %43 = vector.load %arg9[%c0_20, %c0_21] : memref<8x32xf32, #tpu.memory_space<vmem>>, vector<8x32xf32>
    %44 = vector.broadcast %29 : vector<8x1xf32> to vector<8x32xf32>
    %45 = arith.mulf %44, %43 : vector<8x32xf32>
    %46 = arith.addf %45, %42 : vector<8x32xf32>
    %c0_22 = arith.constant 0 : index
    %c0_23 = arith.constant 0 : index
    %47 = vector.load %arg9[%c0_22, %c0_23] : memref<8x32xf32, #tpu.memory_space<vmem>>, vector<8x32xf32>
    tpu.vector_store %arg9[%c0_22, %c0_23], %46 {strides = array<i32>} : memref<8x32xf32, #tpu.memory_space<vmem>>, vector<8x32xf32>,
    %c0_24 = arith.constant 0 : index
    %c0_25 = arith.constant 0 : index
    %48 = vector.load %arg7[%c0_24, %c0_25] : memref<8x1xf32, #tpu.memory_space<vmem>>, vector<8x1xf32>
    tpu.vector_store %arg7[%c0_24, %c0_25], %27 {strides = array<i32>} : memref<8x1xf32, #tpu.memory_space<vmem>>, vector<8x1xf32>,
    %c0_i32_26 = arith.constant 0 : i32
    %49 = arith.cmpi eq, %arg1, %c0_i32_26 : i32
    %50 = arith.extui %49 : i1 to i32
    %c0_i32_27 = arith.constant 0 : i32
    %51 = arith.cmpi ne, %50, %c0_i32_27 : i32
    scf.if %51 {
      %c0_28 = arith.constant 0 : index
      %c0_29 = arith.constant 0 : index
      %52 = vector.load %arg9[%c0_28, %c0_29] : memref<8x32xf32, #tpu.memory_space<vmem>>, vector<8x32xf32>
      %c0_30 = arith.constant 0 : index
      %c0_31 = arith.constant 0 : index
      %53 = vector.load %arg8[%c0_30, %c0_31] : memref<8x1xf32, #tpu.memory_space<vmem>>, vector<8x1xf32>
      %54 = vector.broadcast %53 : vector<8x1xf32> to vector<8x32xf32>
      %55 = arith.divf %52, %54 : vector<8x32xf32>
      %c0_32 = arith.constant 0 : index
      %c0_33 = arith.constant 0 : index
      %56 = vector.load %arg6[%c0_32, %c0_33] : memref<8x32xf32, #tpu.memory_space<vmem>>, vector<8x32xf32>
      tpu.vector_store %arg6[%c0_32, %c0_33], %55 {strides = array<i32>} : memref<8x32xf32, #tpu.memory_space<vmem>>, vector<8x32xf32>,
    } else {
    }
    return
  }
  func.func @transform_0(%arg0: i32, %arg1: i32) -> (i32, i32, i32) {
    %c0_i32 = arith.constant 0 : i32
    %c0_i32_0 = arith.constant 0 : i32
    return %arg0, %arg1, %c0_i32 : i32, i32, i32
  }
  func.func @transform_1(%arg0: i32, %arg1: i32) -> (i32, i32) {
    %c0_i32 = arith.constant 0 : i32
    %c0_i32_0 = arith.constant 0 : i32
    return %arg0, %c0_i32 : i32, i32
  }
  func.func @transform_2(%arg0: i32, %arg1: i32) -> (i32, i32) {
    %c0_i32 = arith.constant 0 : i32
    %c0_i32_0 = arith.constant 0 : i32
    %c0_i32_1 = arith.constant 0 : i32
    return %c0_i32, %c0_i32_0 : i32, i32
  }
  func.func @transform_3(%arg0: i32, %arg1: i32) -> i32 {
    %c0_i32 = arith.constant 0 : i32
    %c0_i32_0 = arith.constant 0 : i32
    return %c0_i32 : i32
  }
  func.func @transform_4(%arg0: i32, %arg1: i32) -> (i32, i32) {
    %c0_i32 = arith.constant 0 : i32
    %c0_i32_0 = arith.constant 0 : i32
    return %arg0, %c0_i32 : i32, i32
  }
}

</mosaic_0001>

<llo_original>
// kernel: tpu_custom_call.1
$region0: #{tpu_custom_call.1}
  #allocation0 [shape = 'u32[]', space=smem, size = 0x4, offset = 0x4, fixed_abs, tag = 'smem constant byte address 0x4 - core index']
  #allocation1 [shape = 'u32[144,128]{1,0:T(1,128)}', space=vmem, size = 0x12000, scoped, tag = 'internal scratch']
  #allocation2 [shape = 'f32[8,1]{1,0:T(8,128)}', space=vmem, size = 0x1000, scoped, tag = 'scratch operand']
  #allocation3 [shape = 'f32[8,1]{1,0:T(8,128)}', space=vmem, size = 0x1000, scoped, tag = 'scratch operand']
  #allocation4 [shape = 'f32[8,32]{1,0:T(8,128)}', space=vmem, size = 0x1000, scoped, tag = 'scratch operand']
  #allocation5 [shape = 'f32[1]{0:T(128)S(6)}', space=smem, size = 0x200, scoped, tag = 'scoped memory for tpu_custom_call.1']
  %s0 = inlined_call_operand.hbm [shape: f32[16,8,32], index: 0, kind: input, shape index: {}]
  %s1 = inlined_call_operand.hbm [shape: f32[16,32], index: 1, kind: input, shape index: {}]
  %s2 = inlined_call_operand.vmem [shape: f32[2,32], index: 2, kind: input, shape index: {}]
  %s3 = inlined_call_operand.<no memory space> [shape: f32[1], index: 3, kind: input, shape index: {}]
  %s4 = inlined_call_operand.hbm [shape: f32[16,32], index: 4, kind: output, shape index: {}]
  %s5 = sld [smem:[#allocation0]]
  $region65: #{tpu_custom_call.1} parent=0
    _
  %s7 = ssub.s32 1, %s5
  %s8 = scalar_select 0, %s7, %s5
  %9 = sst [smem:[#allocation5]] %s3
  $region1: #{tpu_custom_call.1} parent=0
    #allocation6 [shape = 'u8[65536]{0}', space=vmem, size = 0x10000, scoped, tag = 'input window, operand 0']
    #allocation7 [shape = 's32[2]{0}', space=sflag, size = 0x8, scoped, tag = 'scoped memory for tpu_custom_call.1']
    #allocation8 [shape = 's32[2]{0}', space=sflag, size = 0x8, scoped, tag = 'scoped memory for tpu_custom_call.1']
    #allocation9 [shape = 'u8[8192]{0}', space=vmem, size = 0x2000, scoped, tag = 'input window, operand 1']
    #allocation10 [shape = 's32[2]{0}', space=sflag, size = 0x8, scoped, tag = 'scoped memory for tpu_custom_call.1']
    #allocation11 [shape = 'u8[8192]{0}', space=vmem, size = 0x2000, scoped, tag = 'output window, operand 0']
    %10 = vsyncpa [#allocation7], 0
    %s11 = scalar_lea.sflag [#allocation7], 1
    %12 = vsyncpa %s11, 0
    %13 = vsyncpa [#allocation10], 0
    %s14 = scalar_lea.sflag [#allocation10], 1
    %15 = vsyncpa %s14, 0
    %16 = vsyncpa [#allocation8], 0
    %s17 = scalar_lea.sflag [#allocation8], 1
    %18 = vsyncpa %s17, 0
    loop: start=0, step=1, limit=4
    $region2: #{tpu_custom_call.1} parent=1 // loop_pre_header
      _
    $region3: #{tpu_custom_call.1} parent=1 // loop_header
      %s20 = sphi 0, %s24
      %p21 = scmp.ge.s32.totalorder %s20, 4
      %s27 = sphi 0, %s39
      %s28 = sphi 0, %s35
      %s29 = sphi 0, %s27
      %s30 = sphi 0, %s28
      %s31 = sphi 0, %s29
      %s32 = sphi 0, %s30
      %s44 = sphi 0, %s46
      %s47 = sphi 0, %s44
      %s48 = sphi 0, %s47
      %s64 = sphi 0, %s48
      %s70 = sphi 0, %s72
      %s73 = sphi 0, %s70
      %s74 = sphi 0, %s73
      %s90 = sphi 0, %s74
      %s94 = sphi 0, %s94
      %s96 = sphi 0, %s94
      %s97 = sphi 0, %s96
      %s111 = sphi 0, %s97
      %s115 = sphi 0, %s115
      %s117 = sphi 0, %s115
      %s118 = sphi 0, %s117
      %s132 = sphi 0, %s118
      %s138 = sphi 0, %s140
      %s141 = sphi 0, %s138
      %s142 = sphi 0, %s141
      %s158 = sphi 0, %s142
    $region4: #{tpu_custom_call.1} parent=1 // loop_header_branch
      %23 = sbr.rel (%p21) target = $region8
    $region5: #{tpu_custom_call.1} parent=1 // loop_body
      %s25 = ssub.s32 %s20, 1
      %s26 = ssub.s32 %s20, 2
      %s33 = sadd.s32 1, %s28
      %p34 = scmp.ge.s32.totalorder %s33, 1
      %s35 = scalar_select %p34, 0, %s33
      %s36 = sadd.s32 1, %s27
      %s37 = scalar_select %p34, %s36, %s27
      %p38 = scmp.ge.s32.totalorder %s37, 2
      %s39 = scalar_select %p38, 0, %s37
      %s40 = ssub.s32 %s27, %s39
      %s41 = ssub.s32 %s28, %s35
      %s42 = sor.u32 %s40, %s41
      %p43 = scmp.eq.s32.totalorder %s42, 0
      %s45 = sadd.s32 %s44, 1
      %s46 = scalar_select %p43, %s44, %s45
      %p49 = pneg %p43
      %p50 = scmp.eq.s32.totalorder %s20, 1
      %p51 = por %p49, %p50
      %p52 = scmp.ne.s32.totalorder %s44, %s47
      %p53 = scmp.eq.s32.totalorder %s20, 0
      %p54 = por %p52, %p53
      %p55 = scmp.ne.s32.totalorder %s44, %s47
      %p56 = scmp.eq.s32.totalorder %s25, 1
      %p57 = por %p55, %p56
      %p58 = scmp.ne.s32.totalorder %s47, %s48
      %p59 = scmp.eq.s32.totalorder %s25, 0
      %p60 = por %p58, %p59
      %p61 = scmp.ne.s32.totalorder %s47, %s48
      %p62 = scmp.eq.s32.totalorder %s26, 1
      %p63 = por %p61, %p62
      %p65 = scmp.ne.s32.totalorder %s48, %s64
      %p66 = scmp.eq.s32.totalorder %s26, 0
      %p67 = por %p65, %p66
      %s68 = ssub.s32 %s27, %s39
      %p69 = scmp.eq.s32.totalorder %s68, 0
      %s71 = sadd.s32 %s70, 1
      %s72 = scalar_select %p69, %s70, %s71
      %p75 = pneg %p69
      %p76 = scmp.eq.s32.totalorder %s20, 1
      %p77 = por %p75, %p76
      %p78 = scmp.ne.s32.totalorder %s70, %s73
      %p79 = scmp.eq.s32.totalorder %s20, 0
      %p80 = por %p78, %p79
      %p81 = scmp.ne.s32.totalorder %s70, %s73
      %p82 = scmp.eq.s32.totalorder %s25, 1
      %p83 = por %p81, %p82
      %p84 = scmp.ne.s32.totalorder %s73, %s74
      %p85 = scmp.eq.s32.totalorder %s25, 0
      %p86 = por %p84, %p85
      %p87 = scmp.ne.s32.totalorder %s73, %s74
      %p88 = scmp.eq.s32.totalorder %s26, 1
      %p89 = por %p87, %p88
      %p91 = scmp.ne.s32.totalorder %s74, %s90
      %p92 = scmp.eq.s32.totalorder %s26, 0
      %p93 = por %p91, %p92
      %s95 = sadd.s32 %s94, 1
      %p98 = scmp.eq.s32.totalorder %s20, 1
      %p99 = scmp.ne.s32.totalorder %s94, %s96
      %p100 = scmp.eq.s32.totalorder %s20, 0
      %p101 = por %p99, %p100
      %p102 = scmp.ne.s32.totalorder %s94, %s96
      %p103 = scmp.eq.s32.totalorder %s25, 1
      %p104 = por %p102, %p103
      %p105 = scmp.ne.s32.totalorder %s96, %s97
      %p106 = scmp.eq.s32.totalorder %s25, 0
      %p107 = por %p105, %p106
      %p108 = scmp.ne.s32.totalorder %s96, %s97
      %p109 = scmp.eq.s32.totalorder %s26, 1
      %p110 = por %p108, %p109
      %p112 = scmp.ne.s32.totalorder %s97, %s111
      %p113 = scmp.eq.s32.totalorder %s26, 0
      %p114 = por %p112, %p113
      %s116 = sadd.s32 %s115, 1
      %p119 = scmp.eq.s32.totalorder %s20, 1
      %p120 = scmp.ne.s32.totalorder %s115, %s117
      %p121 = scmp.eq.s32.totalorder %s20, 0
      %p122 = por %p120, %p121
      %p123 = scmp.ne.s32.totalorder %s115, %s117
      %p124 = scmp.eq.s32.totalorder %s25, 1
      %p125 = por %p123, %p124
      %p126 = scmp.ne.s32.totalorder %s117, %s118
      %p127 = scmp.eq.s32.totalorder %s25, 0
      %p128 = por %p126, %p127
      %p129 = scmp.ne.s32.totalorder %s117, %s118
      %p130 = scmp.eq.s32.totalorder %s26, 1
      %p131 = por %p129, %p130
      %p133 = scmp.ne.s32.totalorder %s118, %s132
      %p134 = scmp.eq.s32.totalorder %s26, 0
      %p135 = por %p133, %p134
      %s136 = ssub.s32 %s27, %s39
      %p137 = scmp.eq.s32.totalorder %s136, 0
      %s139 = sadd.s32 %s138, 1
      %s140 = scalar_select %p137, %s138, %s139
      %p143 = pneg %p137
      %p144 = scmp.eq.s32.totalorder %s20, 1
      %p145 = por %p143, %p144
      %p146 = scmp.ne.s32.totalorder %s138, %s141
      %p147 = scmp.eq.s32.totalorder %s20, 0
      %p148 = por %p146, %p147
      %p149 = scmp.ne.s32.totalorder %s138, %s141
      %p150 = scmp.eq.s32.totalorder %s25, 1
      %p151 = por %p149, %p150
      %p152 = scmp.ne.s32.totalorder %s141, %s142
      %p153 = scmp.eq.s32.totalorder %s25, 0
      %p154 = por %p152, %p153
      %p155 = scmp.ne.s32.totalorder %s141, %s142
      %p156 = scmp.eq.s32.totalorder %s26, 1
      %p157 = por %p155, %p156
      %p159 = scmp.ne.s32.totalorder %s142, %s158
      %p160 = scmp.eq.s32.totalorder %s26, 0
      %p161 = por %p159, %p160
      %p162 = scmp.le.s32.totalorder 1, %s20
      %p163 = scmp.lt.s32.totalorder %s20, 3
      %p164 = pnand %p162, %p163
      %p165 = pneg %p164
      // Predicated region
      $region9: #{tpu_custom_call.1} parent=5 // pred_check
        _
      $region10: #{tpu_custom_call.1} parent=5 // pred_check_branch
        %167 = sbr.rel (%p164) target = $region12
      $region11: #{tpu_custom_call.1} parent=5 // pred_region
        %s168 = ssub.s32 %s20, 1
        // Predicated region
        $region13: #{tpu_custom_call.1} parent=11 // pred_check
          %p169 = pneg %p107
        $region14: #{tpu_custom_call.1} parent=11 // pred_check_branch
          %171 = sbr.rel (%p169) target = $region16
        $region15: #{tpu_custom_call.1} parent=11 // pred_region
          _
        $region16: #{tpu_custom_call.1} parent=11 // pred_fallthru
          _
        // Predicated region
        $region17: #{tpu_custom_call.1} parent=11 // pred_check
          %p172 = pneg %p128
        $region18: #{tpu_custom_call.1} parent=11 // pred_check_branch
          %174 = sbr.rel (%p172) target = $region20
        $region19: #{tpu_custom_call.1} parent=11 // pred_region
          _
        $region20: #{tpu_custom_call.1} parent=11 // pred_fallthru
          _
      $region12: #{tpu_custom_call.1} parent=5 // pred_fallthru
        _
      %p175 = scmp.lt.s32.totalorder %s20, 2
      // Predicated region
      $region21: #{tpu_custom_call.1} parent=5 // pred_check
        %p176 = pneg %p175
      $region22: #{tpu_custom_call.1} parent=5 // pred_check_branch
        %178 = sbr.rel (%p176) target = $region24
      $region23: #{tpu_custom_call.1} parent=5 // pred_region
        // Predicated region
        $region25: #{tpu_custom_call.1} parent=23 // pred_check
          %p179 = pneg %p54
        $region26: #{tpu_custom_call.1} parent=23 // pred_check_branch
          %181 = sbr.rel (%p179) target = $region28
        $region27: #{tpu_custom_call.1} parent=23 // pred_region
          %s182 = sand.u32 %s44, 1
          %s183 = scalar_lea.sflag [#allocation7], %s182
          %s184 = sand.u32 %s44, 1
          %s185 = smul.addr %s184, 64
          %s186 = scalar_lea.vmem [#allocation6], %s185
          %s187 = smul.u32 8, %s27
          %s189 = ssub.s32 1024, 1024
          %190 = vsyncadd %s183, %s189
          %s191 = sadd.s32 %s28, %s187
          %s192 = smul.addr %s191, 128
          %s193 = scalar_lea.hbm %s0, %s192
          %s194 = sshll.u32 %s186, 4
          %s195 = int_to_ptr.vmem [resolvable:$true] %s194
          %200 = dma.hbm_to_vmem [thread:$0]  %s193, 1024, %s195, %s183, 128, 128, 8
        $region28: #{tpu_custom_call.1} parent=23 // pred_fallthru
          _
        // Predicated region
        $region29: #{tpu_custom_call.1} parent=23 // pred_check
          %p201 = pneg %p80
        $region30: #{tpu_custom_call.1} parent=23 // pred_check_branch
          %203 = sbr.rel (%p201) target = $region32
        $region31: #{tpu_custom_call.1} parent=23 // pred_region
          %s204 = sand.u32 %s70, 1
          %s205 = scalar_lea.sflag [#allocation10], %s204
          %s206 = sand.u32 %s70, 1
          %s207 = smul.addr %s206, 8
          %s208 = scalar_lea.vmem [#allocation9], %s207
          %s210 = ssub.s32 128, 128
          %211 = vsyncadd %s205, %s210
          %s212 = smul.addr %s27, 128
          %s213 = scalar_lea.hbm %s1, %s212
          %s215 = sshll.u32 %s208, 4
          %s216 = int_to_ptr.vmem [resolvable:$true] %s215
          %218 = dma.hbm_to_vmem [thread:$0]  %s213, 128, %s216, %s205
        $region32: #{tpu_custom_call.1} parent=23 // pred_fallthru
          _
      $region24: #{tpu_custom_call.1} parent=5 // pred_fallthru
        _
      %p219 = scmp.le.s32.totalorder 1, %s20
      %p220 = scmp.lt.s32.totalorder %s20, 3
      %p221 = pnand %p219, %p220
      %p222 = pneg %p221
      // Predicated region
      $region33: #{tpu_custom_call.1} parent=5 // pred_check
        _
      $region34: #{tpu_custom_call.1} parent=5 // pred_check_branch
        %224 = sbr.rel (%p221) target = $region36
      $region35: #{tpu_custom_call.1} parent=5 // pred_region
        %s225 = ssub.s32 %s20, 1
        %s226 = sand.u32 %s47, 1
        %s227 = scalar_lea.sflag [#allocation7], %s226
        %s228 = sand.u32 %s47, 1
        %s229 = smul.addr %s228, 64
        %s230 = scalar_lea.vmem [#allocation6], %s229
        // Predicated region
        $region37: #{tpu_custom_call.1} parent=35 // pred_check
          %p231 = pneg %p60
        $region38: #{tpu_custom_call.1} parent=35 // pred_check_branch
          %233 = sbr.rel (%p231) target = $region40
        $region39: #{tpu_custom_call.1} parent=35 // pred_region
          %234 = dma.done %s227, 1024
        $region40: #{tpu_custom_call.1} parent=35 // pred_fallthru
          _
        %s235 = sand.u32 %s73, 1
        %s236 = scalar_lea.sflag [#allocation10], %s235
        %s237 = sand.u32 %s73, 1
        %s238 = smul.addr %s237, 8
        %s239 = scalar_lea.vmem [#allocation9], %s238
        // Predicated region
        $region41: #{tpu_custom_call.1} parent=35 // pred_check
          %p240 = pneg %p86
        $region42: #{tpu_custom_call.1} parent=35 // pred_check_branch
          %242 = sbr.rel (%p240) target = $region44
        $region43: #{tpu_custom_call.1} parent=35 // pred_region
          %243 = dma.done %s236, 128
        $region44: #{tpu_custom_call.1} parent=35 // pred_fallthru
          _
        %s244 = sand.u32 %s47, 1
        %s245 = scalar_lea.sflag [#allocation7], %s244
        %s246 = sand.u32 %s47, 1
        %s247 = smul.addr %s246, 64
        %s248 = scalar_lea.vmem [#allocation6], %s247
        %p249 = pneg %p60
        %p250 = pneg %p57
        %s251 = sand.u32 %s73, 1
        %s252 = scalar_lea.sflag [#allocation10], %s251
        %s253 = sand.u32 %s73, 1
        %s254 = smul.addr %s253, 8
        %s255 = scalar_lea.vmem [#allocation9], %s254
        %p256 = pneg %p86
        %p257 = pneg %p83
        %p258 = pneg %p107
        %p259 = pneg %p104
        %p260 = pneg %p128
        %p261 = pneg %p125
        %p262 = pneg %p154
        %p263 = pneg %p151
        %s264 = sand.u32 %s141, 1
        %s265 = scalar_lea.sflag [#allocation8], %s264
        %s266 = sand.u32 %s141, 1
        %s267 = smul.addr %s266, 8
        %s268 = scalar_lea.vmem [#allocation11], %s267
        %s269 = smul.u32 8, %s29
        %p270 = scmp.eq.s32.totalorder %s30, 0
        // Predicated region
        $region45: #{tpu_custom_call.1} parent=35 // pred_check
          %p271 = pneg %p270
        $region46: #{tpu_custom_call.1} parent=35 // pred_check_branch
          %273 = sbr.rel (%p271) target = $region48
        $region47: #{tpu_custom_call.1} parent=35 // pred_region
          %vm274 = vcmask 7168
          %275 = vst.msk [vmem:[#allocation2] sm:$0xff] %vm274, -inf
          %276 = vst.msk [vmem:[#allocation3] sm:$0xff] %vm274, 0.0
          %vm277 = vcmask 261120
          %278 = vst.msk [vmem:[#allocation4] sm:$0xff] %vm277, 0.0
        $region48: #{tpu_custom_call.1} parent=35 // pred_fallthru
          _
        %v279 = vld [vmem:[%s230] sm:$0xff]
        %v280 = vld [vmem:[%s230 + $0x8] sm:$0xff]
        %v281 = vld [vmem:[%s230 + $0x10] sm:$0xff]
        %v282 = vld [vmem:[%s230 + $0x18] sm:$0xff]
        %v283 = vld [vmem:[%s230 + $0x20] sm:$0xff]
        %v284 = vld [vmem:[%s230 + $0x28] sm:$0xff]
        %v285 = vld [vmem:[%s230 + $0x30] sm:$0xff]
        %v286 = vld [vmem:[%s230 + $0x38] sm:$0xff]
        %v287 = vld [vmem:[%s239] sm:$0xff]
        %v288 = vld [vmem:[%s2] sm:$0x1]
        %v289 = vld [vmem:[%s2 + $0x1] sm:$0x1]
        %s290 = sld [smem:[#allocation5]]
        %v291 = vtanh.pop %v279
        %v292 = vtanh.pop %v280
        %v293 = vtanh.pop %v281
        %v294 = vtanh.pop %v282
        %v295 = vtanh.pop %v283
        %v296 = vtanh.pop %v284
        %v297 = vtanh.pop %v285
        %v298 = vtanh.pop %v286
        %v299 = vtanh.pop %v287
        %v300 = vlaneseq
        %v301 = vshrl.u32 %v300, 7
        %v302 = vsub.s32 0, %v301
        %v303 = vrot.slane %v288, %v302
        %v304 = vmul.f32 %v291, %v303
        %v305 = vmul.f32 %v292, %v303
        %v306 = vmul.f32 %v293, %v303
        %v307 = vmul.f32 %v294, %v303
        %v308 = vmul.f32 %v295, %v303
        %v309 = vmul.f32 %v296, %v303
        %v310 = vmul.f32 %v297, %v303
        %v311 = vmul.f32 %v298, %v303
        %vm312 = vcmask 261120
        %v313 = vsel %vm312, %v304, 0.0
        %314 = vadd.xlane.f32.xlu0 %v313
        %v315 = vpop.xlane.xlu0 %314
        %v316 = vsel %vm312, %v305, 0.0
        %317 = vadd.xlane.f32.xlu0 %v316
        %v318 = vpop.xlane.xlu0 %317
        %v319 = vsel %vm312, %v306, 0.0
        %320 = vadd.xlane.f32.xlu0 %v319
        %v321 = vpop.xlane.xlu0 %320
        %v322 = vsel %vm312, %v307, 0.0
        %323 = vadd.xlane.f32.xlu0 %v322
        %v324 = vpop.xlane.xlu0 %323
        %v325 = vsel %vm312, %v308, 0.0
        %326 = vadd.xlane.f32.xlu0 %v325
        %v327 = vpop.xlane.xlu0 %326
        %v328 = vsel %vm312, %v309, 0.0
        %329 = vadd.xlane.f32.xlu0 %v328
        %v330 = vpop.xlane.xlu0 %329
        %v331 = vsel %vm312, %v310, 0.0
        %332 = vadd.xlane.f32.xlu0 %v331
        %v333 = vpop.xlane.xlu0 %332
        %v334 = vsel %vm312, %v311, 0.0
        %335 = vadd.xlane.f32.xlu0 %v334
        %v336 = vpop.xlane.xlu0 %335
        %v337 = vlaneseq
        %v338 = vshrl.u32 %v337, 7
        %v339 = vsub.s32 0, %v338
        %v340 = vrot.slane %v289, %v339
        %v341 = vmul.f32 %v299, %v340
        %v342 = vsel %vm312, %v341, 0.0
        %343 = vadd.xlane.f32.xlu0 %v342
        %v344 = vpop.xlane.xlu0 %343
        %v346 = vlaneseq
        %v347 = vshrl.u32 %v346, 7
        %v348 = vsub.s32 0, %v347
        %v349 = vrot.slane %v344, %v348
        %v350 = vlaneseq
        %v351 = vshrl.u32 %v350, 7
        %v352 = vsub.s32 1, %v351
        %v353 = vrot.slane %v344, %v352
        %v354 = vlaneseq
        %v355 = vshrl.u32 %v354, 7
        %v356 = vsub.s32 2, %v355
        %v357 = vrot.slane %v344, %v356
        %v358 = vlaneseq
        %v359 = vshrl.u32 %v358, 7
        %v360 = vsub.s32 3, %v359
        %v361 = vrot.slane %v344, %v360
        %v362 = vlaneseq
        %v363 = vshrl.u32 %v362, 7
        %v364 = vsub.s32 4, %v363
        %v365 = vrot.slane %v344, %v364
        %v366 = vlaneseq
        %v367 = vshrl.u32 %v366, 7
        %v368 = vsub.s32 5, %v367
        %v369 = vrot.slane %v344, %v368
        %v370 = vlaneseq
        %v371 = vshrl.u32 %v370, 7
        %v372 = vsub.s32 6, %v371
        %v373 = vrot.slane %v344, %v372
        %v374 = vlaneseq
        %v375 = vshrl.u32 %v374, 7
        %v376 = vsub.s32 7, %v375
        %v377 = vrot.slane %v344, %v376
        %v386 = vadd.f32 %v315, %v349
        %v387 = vadd.f32 %v318, %v353
        %v388 = vadd.f32 %v321, %v357
        %v389 = vadd.f32 %v324, %v361
        %v390 = vadd.f32 %v327, %v365
        %v391 = vadd.f32 %v330, %v369
        %v392 = vadd.f32 %v333, %v373
        %v393 = vadd.f32 %v336, %v377
        %v394 = vstv %s290
        %v395 = vadd.f32 %v386, %v394
        %v396 = vadd.f32 %v387, %v394
        %v397 = vadd.f32 %v388, %v394
        %v398 = vadd.f32 %v389, %v394
        %v399 = vadd.f32 %v390, %v394
        %v400 = vadd.f32 %v391, %v394
        %v401 = vadd.f32 %v392, %v394
        %v402 = vadd.f32 %v393, %v394
        %v403 = vmax.f32 %v395, 0.0
        %v404 = vmax.f32 %v396, 0.0
        %v405 = vmax.f32 %v397, 0.0
        %v406 = vmax.f32 %v398, 0.0
        %v407 = vmax.f32 %v399, 0.0
        %v408 = vmax.f32 %v400, 0.0
        %v409 = vmax.f32 %v401, 0.0
        %v410 = vmax.f32 %v402, 0.0
        %v411 = vld [vmem:[#allocation2] sm:$0xff]
        %420 = vset.pattern.permute.xlu0 0
        %421 = vperm.xlu0 %420, %v403
        %v422 = vpop.permute.xlu0 %421
        %423 = vset.pattern.permute.xlu0 0
        %424 = vperm.xlu0 %423, %v404
        %v425 = vpop.permute.xlu0 %424
        %426 = vset.pattern.permute.xlu0 0
        %427 = vperm.xlu0 %426, %v405
        %v428 = vpop.permute.xlu0 %427
        %429 = vset.pattern.permute.xlu0 0
        %430 = vperm.xlu0 %429, %v406
        %v431 = vpop.permute.xlu0 %430
        %432 = vset.pattern.permute.xlu0 0
        %433 = vperm.xlu0 %432, %v407
        %v434 = vpop.permute.xlu0 %433
        %435 = vset.pattern.permute.xlu0 0
        %436 = vperm.xlu0 %435, %v408
        %v437 = vpop.permute.xlu0 %436
        %438 = vset.pattern.permute.xlu0 0
        %439 = vperm.xlu0 %438, %v409
        %v440 = vpop.permute.xlu0 %439
        %441 = vset.pattern.permute.xlu0 0
        %442 = vperm.xlu0 %441, %v410
        %v443 = vpop.permute.xlu0 %442
        %v444 = vlaneseq
        %v445 = vand.u32 %v444, 127
        %v446 = vlaneseq
        %v447 = vshrl.u32 %v446, 7
        %v448 = vsub.s32 %v445, %v447
        %v449 = vrot.slane %v422, %v448
        %v450 = vlaneseq
        %v451 = vshrl.u32 %v450, 7
        %v452 = vsub.s32 %v445, %v451
        %v453 = vrot.slane %v425, %v452
        %v454 = vlaneseq
        %v455 = vshrl.u32 %v454, 7
        %v456 = vsub.s32 %v445, %v455
        %v457 = vrot.slane %v428, %v456
        %v458 = vlaneseq
        %v459 = vshrl.u32 %v458, 7
        %v460 = vsub.s32 %v445, %v459
        %v461 = vrot.slane %v431, %v460
        %v462 = vlaneseq
        %v463 = vshrl.u32 %v462, 7
        %v464 = vsub.s32 %v445, %v463
        %v465 = vrot.slane %v434, %v464
        %v466 = vlaneseq
        %v467 = vshrl.u32 %v466, 7
        %v468 = vsub.s32 %v445, %v467
        %v469 = vrot.slane %v437, %v468
        %v470 = vlaneseq
        %v471 = vshrl.u32 %v470, 7
        %v472 = vsub.s32 %v445, %v471
        %v473 = vrot.slane %v440, %v472
        %v474 = vlaneseq
        %v475 = vshrl.u32 %v474, 7
        %v476 = vsub.s32 %v445, %v475
        %v477 = vrot.slane %v443, %v476
        %vm478 = vcmask 1041409
        %v479 = vsel %vm478, %v453, %v449
        %vm480 = vcmask 1042434
        %v481 = vsel %vm480, %v457, %v479
        %vm482 = vcmask 1043459
        %v483 = vsel %vm482, %v461, %v481
        %vm484 = vcmask 1044484
        %v485 = vsel %vm484, %v465, %v483
        %vm486 = vcmask 1045509
        %v487 = vsel %vm486, %v469, %v485
        %vm488 = vcmask 1046534
        %v489 = vsel %vm488, %v473, %v487
        %vm490 = vcmask 1047559
        %v491 = vsel %vm490, %v477, %v489
        %vm493 = vcmask 64512
        %v494 = vsel %vm493, %v491, -inf
        %495 = vmax.xlane.f32.xlu0 %v494
        %v496 = vpop.xlane.xlu0 %495
        %v497 = vmax.f32 %v411, %v496
        %v498 = vsub.f32 %v411, %v497
        %v499 = vmul.f32 %v498, 1.442695
        %v500 = vpow.pop %v499
        %502 = vset.pattern.permute.xlu0 0
        %503 = vperm.xlu0 %502, %v497
        %v504 = vpop.permute.xlu0 %503
        %v505 = vlaneseq
        %v506 = vshrl.u32 %v505, 7
        %v507 = vsub.s32 0, %v506
        %v508 = vrot.slane %v504, %v507
        %v509 = vlaneseq
        %v510 = vshrl.u32 %v509, 7
        %v511 = vsub.s32 1, %v510
        %v512 = vrot.slane %v504, %v511
        %v513 = vlaneseq
        %v514 = vshrl.u32 %v513, 7
        %v515 = vsub.s32 2, %v514
        %v516 = vrot.slane %v504, %v515
        %v517 = vlaneseq
        %v518 = vshrl.u32 %v517, 7
        %v519 = vsub.s32 3, %v518
        %v520 = vrot.slane %v504, %v519
        %v521 = vlaneseq
        %v522 = vshrl.u32 %v521, 7
        %v523 = vsub.s32 4, %v522
        %v524 = vrot.slane %v504, %v523
        %v525 = vlaneseq
        %v526 = vshrl.u32 %v525, 7
        %v527 = vsub.s32 5, %v526
        %v528 = vrot.slane %v504, %v527
        %v529 = vlaneseq
        %v530 = vshrl.u32 %v529, 7
        %v531 = vsub.s32 6, %v530
        %v532 = vrot.slane %v504, %v531
        %v533 = vlaneseq
        %v534 = vshrl.u32 %v533, 7
        %v535 = vsub.s32 7, %v534
        %v536 = vrot.slane %v504, %v535
        %v545 = vsub.f32 %v403, %v508
        %v546 = vsub.f32 %v404, %v512
        %v547 = vsub.f32 %v405, %v516
        %v548 = vsub.f32 %v406, %v520
        %v549 = vsub.f32 %v407, %v524
        %v550 = vsub.f32 %v408, %v528
        %v551 = vsub.f32 %v409, %v532
        %v552 = vsub.f32 %v410, %v536
        %v553 = vmul.f32 %v545, 1.442695
        %v554 = vpow.pop %v553
        %v555 = vmul.f32 %v546, 1.442695
        %v556 = vpow.pop %v555
        %v557 = vmul.f32 %v547, 1.442695
        %v558 = vpow.pop %v557
        %v559 = vmul.f32 %v548, 1.442695
        %v560 = vpow.pop %v559
        %v561 = vmul.f32 %v549, 1.442695
        %v562 = vpow.pop %v561
        %v563 = vmul.f32 %v550, 1.442695
        %v564 = vpow.pop %v563
        %v565 = vmul.f32 %v551, 1.442695
        %v566 = vpow.pop %v565
        %v567 = vmul.f32 %v552, 1.442695
        %v568 = vpow.pop %v567
        %v569 = vld [vmem:[#allocation3] sm:$0xff]
        %v570 = vmul.f32 %v500, %v569
        %579 = vset.pattern.permute.xlu0 0
        %580 = vperm.xlu0 %579, %v554
        %v581 = vpop.permute.xlu0 %580
        %582 = vset.pattern.permute.xlu0 0
        %583 = vperm.xlu0 %582, %v556
        %v584 = vpop.permute.xlu0 %583
        %585 = vset.pattern.permute.xlu0 0
        %586 = vperm.xlu0 %585, %v558
        %v587 = vpop.permute.xlu0 %586
        %588 = vset.pattern.permute.xlu0 0
        %589 = vperm.xlu0 %588, %v560
        %v590 = vpop.permute.xlu0 %589
        %591 = vset.pattern.permute.xlu0 0
        %592 = vperm.xlu0 %591, %v562
        %v593 = vpop.permute.xlu0 %592
        %594 = vset.pattern.permute.xlu0 0
        %595 = vperm.xlu0 %594, %v564
        %v596 = vpop.permute.xlu0 %595
        %597 = vset.pattern.permute.xlu0 0
        %598 = vperm.xlu0 %597, %v566
        %v599 = vpop.permute.xlu0 %598
        %600 = vset.pattern.permute.xlu0 0
        %601 = vperm.xlu0 %600, %v568
        %v602 = vpop.permute.xlu0 %601
        %v603 = vlaneseq
        %v604 = vshrl.u32 %v603, 7
        %v605 = vsub.s32 %v445, %v604
        %v606 = vrot.slane %v581, %v605
        %v607 = vlaneseq
        %v608 = vshrl.u32 %v607, 7
        %v609 = vsub.s32 %v445, %v608
        %v610 = vrot.slane %v584, %v609
        %v611 = vlaneseq
        %v612 = vshrl.u32 %v611, 7
        %v613 = vsub.s32 %v445, %v612
        %v614 = vrot.slane %v587, %v613
        %v615 = vlaneseq
        %v616 = vshrl.u32 %v615, 7
        %v617 = vsub.s32 %v445, %v616
        %v618 = vrot.slane %v590, %v617
        %v619 = vlaneseq
        %v620 = vshrl.u32 %v619, 7
        %v621 = vsub.s32 %v445, %v620
        %v622 = vrot.slane %v593, %v621
        %v623 = vlaneseq
        %v624 = vshrl.u32 %v623, 7
        %v625 = vsub.s32 %v445, %v624
        %v626 = vrot.slane %v596, %v625
        %v627 = vlaneseq
        %v628 = vshrl.u32 %v627, 7
        %v629 = vsub.s32 %v445, %v628
        %v630 = vrot.slane %v599, %v629
        %v631 = vlaneseq
        %v632 = vshrl.u32 %v631, 7
        %v633 = vsub.s32 %v445, %v632
        %v634 = vrot.slane %v602, %v633
        %v635 = vsel %vm478, %v610, %v606
        %v636 = vsel %vm480, %v614, %v635
        %v637 = vsel %vm482, %v618, %v636
        %v638 = vsel %vm484, %v622, %v637
        %v639 = vsel %vm486, %v626, %v638
        %v640 = vsel %vm488, %v630, %v639
        %v641 = vsel %vm490, %v634, %v640
        %v643 = vsel %vm493, %v641, 0.0
        %644 = vadd.xlane.f32.xlu0 %v643
        %v645 = vpop.xlane.xlu0 %644
        %v646 = vadd.f32 %v570, %v645
        %vm647 = vcmask 7168
        %648 = vst.msk [vmem:[#allocation3] sm:$0xff] %vm647, %v646
        %v657 = vmul.f32 %v581, %v279
        %v658 = vmul.f32 %v584, %v280
        %v659 = vmul.f32 %v587, %v281
        %v660 = vmul.f32 %v590, %v282
        %v661 = vmul.f32 %v593, %v283
        %v662 = vmul.f32 %v596, %v284
        %v663 = vmul.f32 %v599, %v285
        %v664 = vmul.f32 %v602, %v286
        %v665 = vsel %vm312, %v657, 0.0
        %v666 = vrot.slane %v665, 4
        %v667 = vadd.f32 %v665, %v666
        %v668 = vrot.slane %v667, 2
        %v669 = vadd.f32 %v667, %v668
        %v670 = vrot.slane %v669, 1
        %v671 = vadd.f32 %v669, %v670
        %v672 = vsel %vm312, %v658, 0.0
        %v673 = vrot.slane %v672, 4
        %v674 = vadd.f32 %v672, %v673
        %v675 = vrot.slane %v674, 2
        %v676 = vadd.f32 %v674, %v675
        %v677 = vrot.slane %v676, 1
        %v678 = vadd.f32 %v676, %v677
        %v679 = vsel %vm312, %v659, 0.0
        %v680 = vrot.slane %v679, 4
        %v681 = vadd.f32 %v679, %v680
        %v682 = vrot.slane %v681, 2
        %v683 = vadd.f32 %v681, %v682
        %v684 = vrot.slane %v683, 1
        %v685 = vadd.f32 %v683, %v684
        %v686 = vsel %vm312, %v660, 0.0
        %v687 = vrot.slane %v686, 4
        %v688 = vadd.f32 %v686, %v687
        %v689 = vrot.slane %v688, 2
        %v690 = vadd.f32 %v688, %v689
        %v691 = vrot.slane %v690, 1
        %v692 = vadd.f32 %v690, %v691
        %v693 = vsel %vm312, %v661, 0.0
        %v694 = vrot.slane %v693, 4
        %v695 = vadd.f32 %v693, %v694
        %v696 = vrot.slane %v695, 2
        %v697 = vadd.f32 %v695, %v696
        %v698 = vrot.slane %v697, 1
        %v699 = vadd.f32 %v697, %v698
        %v700 = vsel %vm312, %v662, 0.0
        %v701 = vrot.slane %v700, 4
        %v702 = vadd.f32 %v700, %v701
        %v703 = vrot.slane %v702, 2
        %v704 = vadd.f32 %v702, %v703
        %v705 = vrot.slane %v704, 1
        %v706 = vadd.f32 %v704, %v705
        %v707 = vsel %vm312, %v663, 0.0
        %v708 = vrot.slane %v707, 4
        %v709 = vadd.f32 %v707, %v708
        %v710 = vrot.slane %v709, 2
        %v711 = vadd.f32 %v709, %v710
        %v712 = vrot.slane %v711, 1
        %v713 = vadd.f32 %v711, %v712
        %v714 = vsel %vm312, %v664, 0.0
        %v715 = vrot.slane %v714, 4
        %v716 = vadd.f32 %v714, %v715
        %v717 = vrot.slane %v716, 2
        %v718 = vadd.f32 %v716, %v717
        %v719 = vrot.slane %v718, 1
        %v720 = vadd.f32 %v718, %v719
        %v721 = vld [vmem:[#allocation4] sm:$0xff]
        %723 = vset.pattern.permute.xlu0 0
        %724 = vperm.xlu0 %723, %v500
        %v725 = vpop.permute.xlu0 %724
        %v727 = vmul.f32 %v725, %v721
        %v736 = vsel %vm478, %v678, %v671
        %v737 = vsel %vm480, %v685, %v736
        %v738 = vsel %vm482, %v692, %v737
        %v739 = vsel %vm484, %v699, %v738
        %v740 = vsel %vm486, %v706, %v739
        %v741 = vsel %vm488, %v713, %v740
        %v742 = vsel %vm490, %v720, %v741
        %v744 = vadd.f32 %v727, %v742
        %745 = vst.msk [vmem:[#allocation4] sm:$0xff] %vm312, %v744
        %746 = vst.msk [vmem:[#allocation2] sm:$0xff] %vm647, %v497
        // Predicated region
        $region49: #{tpu_custom_call.1} parent=35 // pred_check
          %p747 = pneg %p270
        $region50: #{tpu_custom_call.1} parent=35 // pred_check_branch
          %749 = sbr.rel (%p747) target = $region52
        $region51: #{tpu_custom_call.1} parent=35 // pred_region
          %v750 = vld [vmem:[#allocation4] sm:$0xff]
          %v751 = vld [vmem:[#allocation3] sm:$0xff]
          %753 = vset.pattern.permute.xlu0 0
          %754 = vperm.xlu0 %753, %v751
          %v755 = vpop.permute.xlu0 %754
          %v757 = vrcp.pop %v755
          %v758 = vmul.f32 %v750, %v757
          %759 = vst.msk [vmem:[%s268] sm:$0xff] %vm312, %v758
        $region52: #{tpu_custom_call.1} parent=35 // pred_fallthru
          _
        %s760 = sand.u32 %s141, 1
        %s761 = scalar_lea.sflag [#allocation8], %s760
        %s762 = sand.u32 %s141, 1
        %s763 = smul.addr %s762, 8
        %s764 = scalar_lea.vmem [#allocation11], %s763
        // Predicated region
        $region53: #{tpu_custom_call.1} parent=35 // pred_check
          %p765 = pneg %p151
        $region54: #{tpu_custom_call.1} parent=35 // pred_check_branch
          %767 = sbr.rel (%p765) target = $region56
        $region55: #{tpu_custom_call.1} parent=35 // pred_region
          %s769 = ssub.s32 128, 128
          %770 = vsyncadd %s761, %s769
          %s771 = smul.addr %s29, 128
          %s772 = scalar_lea.hbm %s4, %s771
          %s774 = sshll.u32 %s764, 4
          %s775 = int_to_ptr.vmem [resolvable:$true] %s774
          %777 = dma.vmem_to_hbm [thread:$0]  %s775, 128, %s772, %s761
        $region56: #{tpu_custom_call.1} parent=35 // pred_fallthru
          _
      $region36: #{tpu_custom_call.1} parent=5 // pred_fallthru
        _
      %p778 = scmp.le.s32.totalorder 2, %s20
      // Predicated region
      $region57: #{tpu_custom_call.1} parent=5 // pred_check
        %p779 = pneg %p778
      $region58: #{tpu_custom_call.1} parent=5 // pred_check_branch
        %781 = sbr.rel (%p779) target = $region60
      $region59: #{tpu_custom_call.1} parent=5 // pred_region
        %s782 = ssub.s32 %s20, 2
        // Predicated region
        $region61: #{tpu_custom_call.1} parent=59 // pred_check
          %p783 = pneg %p157
        $region62: #{tpu_custom_call.1} parent=59 // pred_check_branch
          %785 = sbr.rel (%p783) target = $region64
        $region63: #{tpu_custom_call.1} parent=59 // pred_region
          %s786 = sand.u32 %s142, 1
          %s787 = scalar_lea.sflag [#allocation8], %s786
          %s788 = sand.u32 %s142, 1
          %s789 = smul.addr %s788, 8
          %s790 = scalar_lea.vmem [#allocation11], %s789
          %791 = dma.done %s787, 128
        $region64: #{tpu_custom_call.1} parent=59 // pred_fallthru
          _
      $region60: #{tpu_custom_call.1} parent=5 // pred_fallthru
        _
    $region6: #{tpu_custom_call.1} parent=1 // loop_footer
      %s24 = sadd.s32 1, %s20
    $region7: #{tpu_custom_call.1} parent=1 // loop_footer_branch
      %19 = sbr.rel target = $region3
    $region8: #{tpu_custom_call.1} parent=1 // loop_exit
      _
    %792 = vsyncpa [#allocation7], 1
    %s793 = scalar_lea.sflag [#allocation7], 1
    %794 = vsyncpa %s793, 1
    %795 = vsyncpa [#allocation10], 1
    %s796 = scalar_lea.sflag [#allocation10], 1
    %797 = vsyncpa %s796, 1
    %798 = vsyncpa [#allocation8], 1
    %s799 = scalar_lea.sflag [#allocation8], 1
    %800 = vsyncpa %s799, 1

</llo_original>
